<compile_context>
chip_gen: v7x
topology: tpu7x:2x2x1
jax: 0.10.0
libtpu: 0.0.40
codegen_flags: <defaults>
</compile_context>

<pallas_src>
import functools
import math

import numpy as np
import jax
import jax.numpy as jnp
from jax import lax
from jax.experimental import pallas as pl
from jax.experimental.pallas import tpu as pltpu

_AFFINE_TRANSFORMS = ("ShearX", "ShearY", "TranslateX", "TranslateY", "Rotate")
_FUSIBLE_EW = ("Invert", "Solarize", "Posterize", "Brightness", "Color")

# Default policy of the module (AutoAugmentPolicy.IMAGENET).
IMAGENET_POLICY = [
    (("Posterize", 0.4, 8), ("Rotate", 0.6, 9)),
    (("Solarize", 0.6, 5), ("AutoContrast", 0.6, None)),
    (("Equalize", 0.8, None), ("Equalize", 0.6, None)),
    (("Posterize", 0.6, 7), ("Posterize", 0.6, 6)),
    (("Equalize", 0.4, None), ("Solarize", 0.2, 4)),
    (("Equalize", 0.4, None), ("Rotate", 0.8, 8)),
    (("Solarize", 0.6, 3), ("Equalize", 0.6, None)),
    (("Posterize", 0.8, 5), ("Equalize", 1.0, None)),
    (("Rotate", 0.2, 3), ("Solarize", 0.6, 8)),
    (("Equalize", 0.6, None), ("Posterize", 0.4, 6)),
    (("Rotate", 0.8, 8), ("Color", 0.4, 0)),
    (("Rotate", 0.4, 9), ("Equalize", 0.6, None)),
    (("Equalize", 0.0, None), ("Equalize", 0.8, None)),
    (("Invert", 0.6, None), ("Equalize", 1.0, None)),
    (("Color", 0.6, 4), ("Contrast", 1.0, 8)),
    (("Rotate", 0.8, 8), ("Color", 1.0, 2)),
    (("Color", 0.8, 8), ("Solarize", 0.8, 7)),
    (("Sharpness", 0.4, 7), ("Invert", 0.6, None)),
    (("ShearX", 0.6, 5), ("Equalize", 1.0, None)),
    (("Color", 0.4, 0), ("Equalize", 0.6, None)),
    (("Equalize", 0.4, None), ("Solarize", 0.2, 4)),
    (("Solarize", 0.6, 5), ("AutoContrast", 0.6, None)),
    (("Invert", 0.6, None), ("Equalize", 1.0, None)),
    (("Color", 0.6, 4), ("Contrast", 1.0, 8)),
    (("Equalize", 0.8, None), ("Equalize", 0.6, None)),
]


def _augmentation_space(num_bins, image_size):
    h, w = image_size
    return {
        "ShearX": (np.linspace(0.0, 0.3, num_bins), True),
        "ShearY": (np.linspace(0.0, 0.3, num_bins), True),
        "TranslateX": (np.linspace(0.0, 150.0 / 331.0 * w, num_bins), True),
        "TranslateY": (np.linspace(0.0, 150.0 / 331.0 * h, num_bins), True),
        "Rotate": (np.linspace(0.0, 30.0, num_bins), True),
        "Brightness": (np.linspace(0.0, 0.9, num_bins), True),
        "Color": (np.linspace(0.0, 0.9, num_bins), True),
        "Contrast": (np.linspace(0.0, 0.9, num_bins), True),
        "Sharpness": (np.linspace(0.0, 0.9, num_bins), True),
        "Posterize": (8 - np.round(np.arange(num_bins) / ((num_bins - 1) / 4)).astype(np.int64), False),
        "Solarize": (np.linspace(255.0, 0.0, num_bins), False),
        "AutoContrast": (np.array(0.0), False),
        "Equalize": (np.array(0.0), False),
        "Invert": (np.array(0.0), False),
    }


# ----------------------------------------------------------------------------------
# Tiling / spec helpers.
# ----------------------------------------------------------------------------------
def _pick_tile(total, target, quantum):
    """Largest multiple of `quantum` that divides `total` and is <= target; else `total`."""
    if total % quantum != 0 or total <= quantum:
        return total
    best = quantum
    for cand in range(quantum, total + 1, quantum):
        if cand > target:
            break
        if total % cand == 0:
            best = cand
    return best


def _smem_spec():
    return pl.BlockSpec(memory_space=pltpu.MemorySpace.SMEM)


def _store(o_ref, x_f32):
    """Store exact-integer f32 values either as bf16 (inter-op) or uint8 (final output)."""
    if o_ref.dtype == jnp.uint8:
        # f32 -> i32 -> u8 avoids unsigned fp conversions; values are exact ints in [0, 255].
        o_ref[...] = jnp.clip(x_f32, 0.0, 255.0).astype(jnp.int32).astype(jnp.uint8)
    else:
        o_ref[...] = x_f32.astype(o_ref.dtype)


def _gray(x):
    # torchvision rgb_to_grayscale on uint8: truncating cast after the weighted sum.
    if x.shape[1] == 3:
        return jnp.floor(0.2989 * x[:, 0:1, :] + 0.587 * x[:, 1:2, :] + 0.114 * x[:, 2:3, :])
    return x  # single-channel: torchvision uses the raw (float) channel for the mean


# ----------------------------------------------------------------------------------
# Fused tile-local elementwise ops (Invert / Solarize / Posterize / Brightness / Color).
# Pixels are bfloat16 in HBM (exact ints 0..255); arithmetic in f32; scalars via SMEM.
# ----------------------------------------------------------------------------------
def _st_invert(x, s0, s1):
    return 255.0 - x


def _st_solarize(x, s0, s1):
    return jnp.where(x >= s0, 255.0 - x, x)


def _st_posterize(x, s0, s1):
    # img & (255 << (8-bits)) == floor(img / q) * q for 0..255
    return jnp.floor(x * s1) * s0


def _st_brightness(x, s0, s1):
    return jnp.floor(jnp.clip(s0 * x, 0.0, 255.0))


def _st_color(x, s0, s1):
    g = _gray(x)
    return jnp.floor(jnp.clip(s0 * x + (1.0 - s0) * g, 0.0, 255.0))


def _make_stage(op_name, magnitude):
    if op_name == "Invert":
        return _st_invert, (0.0, 0.0)
    if op_name == "Solarize":
        return _st_solarize, (float(magnitude), 0.0)
    if op_name == "Posterize":
        q = float(2 ** (8 - int(magnitude)))
        return _st_posterize, (q, 1.0 / q)
    if op_name == "Brightness":
        return _st_brightness, (1.0 + magnitude, 0.0)
    if op_name == "Color":
        return _st_color, (1.0 + magnitude, 0.0)
    raise ValueError(op_name)


def _fused_ew_kernel(s_ref, x_ref, o_ref, *, stage_fns):
    x = x_ref[...].astype(jnp.float32)           # (1, C, hb)
    for idx, fn in enumerate(stage_fns):
        x = fn(x, s_ref[2 * idx], s_ref[2 * idx + 1])
    _store(o_ref, x)


def _apply_fused_elementwise(x4, ops, out_dtype):
    b, c, h, w = x4.shape
    hw = h * w
    x3 = x4.reshape(b, c, hw)
    stage_fns, scal = [], []
    for name, mag in ops:
        fn, (s0, s1) = _make_stage(name, mag)
        stage_fns.append(fn)
        scal.extend([s0, s1])
    scalars = jnp.asarray(scal, jnp.float32)
    hb = _pick_tile(hw, 8192, 128)
    spec = pl.BlockSpec((1, c, hb), lambda i, j: (i, 0, j))
    out = pl.pallas_call(
        functools.partial(_fused_ew_kernel, stage_fns=tuple(stage_fns)),
        grid=(b, hw // hb),
        in_specs=[_smem_spec(), spec],
        out_specs=spec,
        out_shape=jax.ShapeDtypeStruct((b, c, hw), out_dtype),
        compiler_params=pltpu.CompilerParams(dimension_semantics=("parallel", "parallel")),
    )(scalars, x3)
    return out.reshape(b, c, h, w)


# ----------------------------------------------------------------------------------
# Contrast: pass 1 accumulates the per-image grayscale sum, pass 2 blends.
# ----------------------------------------------------------------------------------
def _graysum_kernel(x_ref, sum_ref):
    @pl.when(pl.program_id(1) == 0)
    def _():
        sum_ref[...] = jnp.zeros_like(sum_ref)

    x = x_ref[...].astype(jnp.float32)           # (1, C, hb)
    g = _gray(x)                                 # (1, 1, hb)
    sum_ref[...] += jnp.sum(g, axis=2, keepdims=True)


def _contrast_apply_kernel(s_ref, sum_ref, x_ref, o_ref):
    ratio = s_ref[0]
    mean = sum_ref[...][0, 0, 0] * s_ref[1]
    x = x_ref[...].astype(jnp.float32)
    _store(o_ref, jnp.floor(jnp.clip(ratio * x + (1.0 - ratio) * mean, 0.0, 255.0)))


def _run_contrast(x3, ratio, out_dtype):
    b, c, hw = x3.shape
    hb = _pick_tile(hw, 8192, 128)
    x_spec = pl.BlockSpec((1, c, hb), lambda i, j: (i, 0, j))
    stat_spec = pl.BlockSpec((1, 1, 1), lambda i, j: (i, 0, 0))
    gray_sum = pl.pallas_call(
        _graysum_kernel,
        grid=(b, hw // hb),
        in_specs=[x_spec],
        out_specs=stat_spec,
        out_shape=jax.ShapeDtypeStruct((b, 1, 1), jnp.float32),
        compiler_params=pltpu.CompilerParams(dimension_semantics=("parallel", "arbitrary")),
    )(x3)
    scalars = jnp.asarray([ratio, 1.0 / float(hw)], jnp.float32)
    return pl.pallas_call(
        _contrast_apply_kernel,
        grid=(b, hw // hb),
        in_specs=[_smem_spec(), stat_spec, x_spec],
        out_specs=x_spec,
        out_shape=jax.ShapeDtypeStruct((b, c, hw), out_dtype),
        compiler_params=pltpu.CompilerParams(dimension_semantics=("parallel", "parallel")),
    )(scalars, gray_sum, x3)


# ----------------------------------------------------------------------------------
# AutoContrast: pass 1 accumulates per-(image,channel) min/max, pass 2 rescales.
# ----------------------------------------------------------------------------------
def _minmax_kernel(x_ref, mn_ref, mx_ref):
    @pl.when(pl.program_id(1) == 0)
    def _():
        mn_ref[...] = jnp.full_like(mn_ref, 255.0)
        mx_ref[...] = jnp.zeros_like(mx_ref)

    x = x_ref[...].astype(jnp.float32)           # (1, C, hb)
    mn_ref[...] = jnp.minimum(mn_ref[...], jnp.min(x, axis=2, keepdims=True))
    mx_ref[...] = jnp.maximum(mx_ref[...], jnp.max(x, axis=2, keepdims=True))


def _autocontrast_apply_kernel(mn_ref, mx_ref, x_ref, o_ref):
    x = x_ref[...].astype(jnp.float32)
    mn = mn_ref[...]
    mx = mx_ref[...]
    span = mx - mn
    flat = span == 0.0
    minimum = jnp.where(flat, 0.0, mn)
    scale = jnp.where(flat, 1.0, 255.0 / jnp.where(flat, 1.0, span))
    _store(o_ref, jnp.floor(jnp.clip((x - minimum) * scale, 0.0, 255.0)))


def _run_autocontrast(x3, out_dtype):
    b, c, hw = x3.shape
    hb = _pick_tile(hw, 8192, 128)
    x_spec = pl.BlockSpec((1, c, hb), lambda i, j: (i, 0, j))
    stat_spec = pl.BlockSpec((1, c, 1), lambda i, j: (i, 0, 0))
    mn, mx = pl.pallas_call(
        _minmax_kernel,
        grid=(b, hw // hb),
        in_specs=[x_spec],
        out_specs=(stat_spec, stat_spec),
        out_shape=(jax.ShapeDtypeStruct((b, c, 1), jnp.float32),
                   jax.ShapeDtypeStruct((b, c, 1), jnp.float32)),
        compiler_params=pltpu.CompilerParams(dimension_semantics=("parallel", "arbitrary")),
    )(x3)
    return pl.pallas_call(
        _autocontrast_apply_kernel,
        grid=(b, hw // hb),
        in_specs=[stat_spec, stat_spec, x_spec],
        out_specs=x_spec,
        out_shape=jax.ShapeDtypeStruct((b, c, hw), out_dtype),
        compiler_params=pltpu.CompilerParams(dimension_semantics=("parallel", "parallel")),
    )(mn, mx, x3)


# ----------------------------------------------------------------------------------
# Sharpness: separable 3x3 blur (4 XLU rolls + VPU adds), per-image parallel grid.
# ----------------------------------------------------------------------------------
def _sharpness_kernel(s_ref, x_ref, m_ref, o_ref, *, w):
    ratio = s_ref[0]
    x3 = x_ref[...].astype(jnp.float32)          # (1, C, HW)
    c, hw = x3.shape[1], x3.shape[2]
    x = x3.reshape(c, hw)
    # separable blur: rowsum over dj in {-1,0,1}, then colsum over di in {-1,0,1}
    row = x + pltpu.roll(x, shift=1, axis=1) + pltpu.roll(x, shift=hw - 1, axis=1)
    nine = row + pltpu.roll(row, shift=w, axis=1) + pltpu.roll(row, shift=hw - w, axis=1)
    blurred = jnp.round((nine + 4.0 * x) * (1.0 / 13.0))
    interior = m_ref[...].reshape(1, hw)         # 1.0 on interior pixels, 0.0 on borders
    degenerate = interior * blurred + (1.0 - interior) * x
    out = jnp.floor(jnp.clip(ratio * x + (1.0 - ratio) * degenerate, 0.0, 255.0))
    _store(o_ref, out.reshape(1, c, hw))


@functools.lru_cache(maxsize=16)
def _interior_mask(h, w):
    m = np.zeros((h, w), np.float32)
    if h > 2 and w > 2:
        m[1:h - 1, 1:w - 1] = 1.0
    return jnp.asarray(m.reshape(1, 1, h * w))


def _run_sharpness(x3, ratio, h, w, out_dtype):
    b, c, hw = x3.shape
    mask = _interior_mask(h, w)
    scalars = jnp.asarray([ratio], jnp.float32)
    # TODO(synk): tile the H*W axis with a (w+1)-halo for very large images.
    return pl.pallas_call(
        functools.partial(_sharpness_kernel, w=w),
        grid=(b,),
        in_specs=[_smem_spec(),
                  pl.BlockSpec((1, c, hw), lambda i: (i, 0, 0)),
                  pl.BlockSpec((1, 1, hw), lambda i: (0, 0, 0))],
        out_specs=pl.BlockSpec((1, c, hw), lambda i: (i, 0, 0)),
        out_shape=jax.ShapeDtypeStruct((b, c, hw), out_dtype),
        compiler_params=pltpu.CompilerParams(dimension_semantics=("parallel",)),
    )(scalars, x3, mask)


# ----------------------------------------------------------------------------------
# Equalize: tiled histogram -> per-row LUT build (once) -> tiled LUT apply.
# ----------------------------------------------------------------------------------
def _equalize_hist_kernel(x_ref, hist_ref):
    @pl.when(pl.program_id(1) == 0)
    def _():
        hist_ref[...] = jnp.zeros_like(hist_ref)

    x = x_ref[...].astype(jnp.float32)                            # (rb, hb)
    bins = lax.broadcasted_iota(jnp.float32, x.shape + (256,), 2)
    onehot = (x[:, :, None] == bins).astype(jnp.float32)          # (rb, hb, 256)
    hist_ref[...] += jnp.sum(onehot, axis=1)


def _equalize_lut_kernel(hist_ref, lut_ref, *, hw_total):
    hist = hist_ref[...]                                          # (rb, 256) f32
    nbins = 256
    rb = hist.shape[0]
    v = lax.broadcasted_iota(jnp.float32, (rb, nbins), 1)
    maxbin = jnp.max(jnp.where(hist > 0.0, v, -1.0), axis=1, keepdims=True)
    count_max = jnp.sum(jnp.where(v == maxbin, hist, 0.0), axis=1, keepdims=True)
    step = jnp.floor((float(hw_total) - count_max) / 255.0)       # (rb, 1)
    iu = lax.broadcasted_iota(jnp.int32, (nbins, nbins), 0)
    iv = lax.broadcasted_iota(jnp.int32, (nbins, nbins), 1)
    tri = (iu <= iv).astype(jnp.float32)
    cum = jnp.dot(hist, tri, preferred_element_type=jnp.float32)  # cumulative histogram
    lut_raw = jnp.floor((cum + jnp.floor(step * 0.5)) / jnp.maximum(step, 1.0))
    lut = jnp.concatenate([jnp.zeros((rb, 1), jnp.float32), lut_raw[:, : nbins - 1]], axis=1)
    lut = jnp.clip(lut, 0.0, 255.0)
    lut_ref[...] = jnp.where(step > 0.0, lut, v)                  # step==0 -> identity LUT


def _equalize_apply_kernel(x_ref, lut_ref, o_ref):
    x = x_ref[...].astype(jnp.float32)                            # (rb, hb)
    lut = lut_ref[...]                                            # (rb, 256)
    bins = lax.broadcasted_iota(jnp.float32, x.shape + (256,), 2)
    onehot = (x[:, :, None] == bins).astype(jnp.float32)
    _store(o_ref, jnp.sum(onehot * lut[:, None, :], axis=2))


def _run_equalize(x_flat, out_dtype):
    r, hw = x_flat.shape
    rb = _pick_tile(r, 16, 16)
    hb = _pick_tile(hw, 128, 128)   # small HW tile keeps the (rb, hb, 256) one-hot modest
    row_spec = pl.BlockSpec((rb, 256), lambda i, j: (i, 0))
    tile_spec = pl.BlockSpec((rb, hb), lambda i, j: (i, j))
    hist = pl.pallas_call(
        _equalize_hist_kernel,
        grid=(r // rb, hw // hb),
        in_specs=[tile_spec],
        out_specs=row_spec,
        out_shape=jax.ShapeDtypeStruct((r, 256), jnp.float32),
        compiler_params=pltpu.CompilerParams(dimension_semantics=("parallel", "arbitrary")),
    )(x_flat)
    lut = pl.pallas_call(
        functools.partial(_equalize_lut_kernel, hw_total=hw),
        grid=(r // rb,),
        in_specs=[pl.BlockSpec((rb, 256), lambda i: (i, 0))],
        out_specs=pl.BlockSpec((rb, 256), lambda i: (i, 0)),
        out_shape=jax.ShapeDtypeStruct((r, 256), jnp.float32),
        compiler_params=pltpu.CompilerParams(dimension_semantics=("arbitrary",)),
    )(hist)
    return pl.pallas_call(
        _equalize_apply_kernel,
        grid=(r // rb, hw // hb),
        in_specs=[tile_spec, row_spec],
        out_specs=tile_spec,
        out_shape=jax.ShapeDtypeStruct((r, hw), out_dtype),
        compiler_params=pltpu.CompilerParams(dimension_semantics=("parallel", "parallel")),
    )(x_flat, lut)


# ----------------------------------------------------------------------------------
# Affine warp (nearest, fill=0) via an MXU one-hot gather built from an O(HW) index map.
# The full source row block stays resident (single K tile) whenever it fits VMEM.
# TODO(synk): replace with a true lane/DMA gather for large images.
# ----------------------------------------------------------------------------------
def _gather_kernel(x_ref, src_ref, o_ref, acc_ref, *, k_tile):
    k = pl.program_id(2)

    @pl.when(k == 0)
    def _():
        acc_ref[...] = jnp.zeros_like(acc_ref)

    src = src_ref[...]                                            # (1, nb) int32, -1 -> fill 0
    n_tile = src.shape[1]
    kk = lax.broadcasted_iota(jnp.int32, (k_tile, n_tile), 0) + k * k_tile
    onehot = (kk == src).astype(jnp.bfloat16)                     # (k_tile, nb)
    acc_ref[...] += jnp.dot(x_ref[...].astype(jnp.bfloat16), onehot,
                            preferred_element_type=jnp.float32)

    @pl.when(k == pl.num_programs(2) - 1)
    def _():
        _store(o_ref, acc_ref[...])


def _affine_gather(x_flat, src_idx, out_dtype):
    r, hw = x_flat.shape
    rb = _pick_tile(r, 256, 16)
    nb = _pick_tile(hw, 4096, 128)
    # keep whole source rows resident when modest -> no re-streaming of x per output tile
    kb = hw if rb * hw * 2 <= (2 << 20) else _pick_tile(hw, 8192, 128)
    return pl.pallas_call(
        functools.partial(_gather_kernel, k_tile=kb),
        grid=(r // rb, hw // nb, hw // kb),
        in_specs=[pl.BlockSpec((rb, kb), lambda i, j, k: (i, k)),
                  pl.BlockSpec((1, nb), lambda i, j, k: (0, j))],
        out_specs=pl.BlockSpec((rb, nb), lambda i, j, k: (i, j)),
        out_shape=jax.ShapeDtypeStruct((r, hw), out_dtype),
        scratch_shapes=[pltpu.VMEM((rb, nb), jnp.float32)],
        compiler_params=pltpu.CompilerParams(
            dimension_semantics=("parallel", "parallel", "arbitrary")),
    )(x_flat, src_idx)


def _inv_affine_matrix(center, angle, translate, scale, shear):
    rot = math.radians(angle)
    sx, sy = math.radians(shear[0]), math.radians(shear[1])
    cx, cy = center
    tx, ty = translate
    a = math.cos(rot - sy) / math.cos(sy)
    b = -math.cos(rot - sy) * math.tan(sx) / math.cos(sy) - math.sin(rot)
    c = math.sin(rot - sy) / math.cos(sy)
    d = -math.sin(rot - sy) * math.tan(sx) / math.cos(sy) + math.cos(rot)
    m = [d, -b, 0.0, -c, a, 0.0]
    m = [v / scale for v in m]
    m[2] += m[0] * (-cx - tx) + m[1] * (-cy - ty)
    m[5] += m[3] * (-cx - tx) + m[4] * (-cy - ty)
    m[2] += cx
    m[5] += cy
    return m


def _affine_theta(op_name, magnitude, h, w):
    if op_name == "ShearX":
        return _inv_affine_matrix([-w * 0.5, -h * 0.5], 0.0, [0.0, 0.0], 1.0,
                                  [math.degrees(math.atan(magnitude)), 0.0])
    if op_name == "ShearY":
        return _inv_affine_matrix([-w * 0.5, -h * 0.5], 0.0, [0.0, 0.0], 1.0,
                                  [0.0, math.degrees(math.atan(magnitude))])
    if op_name == "TranslateX":
        return _inv_affine_matrix([0.0, 0.0], 0.0, [float(int(magnitude)), 0.0], 1.0, [0.0, 0.0])
    if op_name == "TranslateY":
        return _inv_affine_matrix([0.0, 0.0], 0.0, [0.0, float(int(magnitude))], 1.0, [0.0, 0.0])
    if op_name == "Rotate":
        return _inv_affine_matrix([0.0, 0.0], -magnitude, [0.0, 0.0], 1.0, [0.0, 0.0])
    raise ValueError(op_name)


@functools.lru_cache(maxsize=64)
def _gather_indices_cached(op_name, magnitude, h, w):
    # TODO(synk): only InterpolationMode.NEAREST (module default) and fill=None implemented.
    theta = np.array(_affine_theta(op_name, magnitude, h, w), dtype=np.float64).reshape(2, 3)
    xs = np.linspace(-w * 0.5 + 0.5, w * 0.5 - 0.5, w)
    ys = np.linspace(-h * 0.5 + 0.5, h * 0.5 - 0.5, h)
    xg, yg = np.meshgrid(xs, ys)
    resc = theta.T / np.array([0.5 * w, 0.5 * h])
    gx = xg * resc[0, 0] + yg * resc[1, 0] + resc[2, 0]
    gy = xg * resc[0, 1] + yg * resc[1, 1] + resc[2, 1]
    src_x = ((gx + 1.0) * w - 1.0) * 0.5                          # grid_sample unnormalize
    src_y = ((gy + 1.0) * h - 1.0) * 0.5
    ix = np.rint(src_x).astype(np.int64)                          # nearest (ties to even)
    iy = np.rint(src_y).astype(np.int64)
    valid = (ix >= 0) & (ix < w) & (iy >= 0) & (iy < h)
    src = np.where(valid, iy * w + ix, -1).astype(np.int32)       # -1 -> fill value 0
    return jnp.asarray(src.reshape(1, h * w))


# ----------------------------------------------------------------------------------
# Identity pass (only when both policy ops were skipped by the probability draw).
# ----------------------------------------------------------------------------------
def _copy_kernel(x_ref, o_ref):
    _store(o_ref, x_ref[...].astype(jnp.float32))


def _run_copy(x_flat, out_dtype):
    r, hw = x_flat.shape
    hb = _pick_tile(hw, 8192, 128)
    spec = pl.BlockSpec((r, hb), lambda j: (0, j))
    return pl.pallas_call(
        _copy_kernel,
        grid=(hw // hb,),
        in_specs=[spec],
        out_specs=spec,
        out_shape=jax.ShapeDtypeStruct((r, hw), out_dtype),
        compiler_params=pltpu.CompilerParams(dimension_semantics=("parallel",)),
    )(x_flat)


# ----------------------------------------------------------------------------------
# Op dispatch + forward
# ----------------------------------------------------------------------------------
def _apply_solo_op(x4, op_name, magnitude, out_dtype, h, w):
    b, c = x4.shape[0], x4.shape[1]
    hw = h * w
    if op_name in _AFFINE_TRANSFORMS:
        src = _gather_indices_cached(op_name, magnitude, h, w)
        out = _affine_gather(x4.reshape(b * c, hw), src, out_dtype)
        return out.reshape(b, c, h, w)
    if op_name == "Contrast":
        return _run_contrast(x4.reshape(b, c, hw), 1.0 + magnitude, out_dtype).reshape(b, c, h, w)
    if op_name == "AutoContrast":
        return _run_autocontrast(x4.reshape(b, c, hw), out_dtype).reshape(b, c, h, w)
    if op_name == "Sharpness":
        return _run_sharpness(x4.reshape(b, c, hw), 1.0 + magnitude, h, w, out_dtype).reshape(b, c, h, w)
    if op_name == "Equalize":
        return _run_equalize(x4.reshape(b * c, hw), out_dtype).reshape(b, c, h, w)
    raise ValueError(f"The provided operator {op_name} is not recognized.")


def auto_augment_forward(img_u8, key, policies=IMAGENET_POLICY):
    """Equivalent of AutoAugmentModel(policy=IMAGENET).forward(img)."""
    b, c, h, w = img_u8.shape
    k_id, k_probs, k_signs = jax.random.split(key, 3)
    transform_id = int(jax.random.randint(k_id, (), 0, len(policies)))
    probs = [float(v) for v in jax.random.uniform(k_probs, (2,))]
    signs = [int(v) for v in jax.random.randint(k_signs, (2,), 0, 2)]

    op_meta = _augmentation_space(10, (h, w))
    selected = []
    gt_transforms = []
    for i, (op_name, p, magnitude_id) in enumerate(policies[transform_id]):
        if probs[i] <= p:
            magnitudes, signed = op_meta[op_name]
            magnitude = float(magnitudes[magnitude_id]) if magnitude_id is not None else 0.0
            if signed and signs[i] == 0:
                magnitude *= -1.0
            if op_name == "Identity":
                continue
            if op_name == "Sharpness" and (h <= 2 or w <= 2):
                continue                                  # torchvision returns img unchanged
            if op_name == "Color" and c != 3:
                continue                                  # adjust_saturation is identity for 1ch
            selected.append((op_name, magnitude))
            if op_name in _AFFINE_TRANSFORMS:
                # TODO(synk): PyTorch returns transform callables; we return (name, magnitude).
                gt_transforms.append((op_name, magnitude))

    # bf16 holds 0..255 exactly -> lossless inter-op storage, half the HBM traffic of f32.
    img = img_u8.astype(jnp.bfloat16)

    # Group consecutive tile-local elementwise ops into a single fused pallas_call.
    groups = []
    for name, mag in selected:
        if name in _FUSIBLE_EW and groups and groups[-1][0] == "ew":
            groups[-1][1].append((name, mag))
        elif name in _FUSIBLE_EW:
            groups.append(("ew", [(name, mag)]))
        else:
            groups.append(("solo", name, mag))

    if not groups:
        out = _run_copy(img.reshape(b * c, h * w), jnp.uint8).reshape(b, c, h, w)
        return out, gt_transforms

    x = img
    n_groups = len(groups)
    for gi, g in enumerate(groups):
        out_dtype = jnp.uint8 if gi == n_groups - 1 else jnp.bfloat16  # last kernel emits uint8
        if g[0] == "ew":
            x = _apply_fused_elementwise(x, g[1], out_dtype)
        else:
            x = _apply_solo_op(x, g[1], g[2], out_dtype, h, w)

    if x.dtype != jnp.uint8:   # safety net; should already be uint8
        x = x.astype(jnp.uint8)
    return x, gt_transforms


if __name__ == "__main__":
    key = jax.random.PRNGKey(0)
    k_img, k_params = jax.random.split(key)
    img = jax.random.randint(k_img, (2, 3, 16, 16), 0, 256, dtype=jnp.int32).astype(jnp.uint8)
    out, gt = auto_augment_forward(img, k_params)
    out = jax.block_until_ready(out)
    assert out.shape == img.shape and out.dtype == jnp.uint8
    print("KERNEL_OK")
</pallas_src>

<mosaic_0001>
module attributes {stable_mosaic.version = 11 : i64} {
  func.func @_sharpness_kernel(%arg0: i32, %arg1: memref<1xf32, #tpu.memory_space<smem>>, %arg2: memref<1x3x256xbf16, #tpu.memory_space<vmem>>, %arg3: memref<1x1x256xf32, #tpu.memory_space<vmem>>, %arg4: memref<1x3x256xbf16, #tpu.memory_space<vmem>>) attributes {dimension_semantics = [#tpu.dimension_semantics<parallel>], iteration_bounds = array<i64: 2>, scalar_prefetch = 0 : i64, scratch_operands = 0 : i64, tpu.core_type = #tpu.core_type<tc>, window_params = [{transform_indices = @transform_0, window_bounds = array<i64: 1>}, {transform_indices = @transform_1, window_bounds = array<i64: 1, 3, 256>}, {pipeline_mode = #tpu.pipeline_mode<synchronous>, transform_indices = @transform_2, window_bounds = array<i64: 1, 1, 256>}, {transform_indices = @transform_3, window_bounds = array<i64: 1, 3, 256>}]} {
    %c0 = arith.constant 0 : index
    %0 = memref.load %arg1[%c0] : memref<1xf32, #tpu.memory_space<smem>>
    %c0_0 = arith.constant 0 : index
    %c0_1 = arith.constant 0 : index
    %c0_2 = arith.constant 0 : index
    %1 = vector.load %arg2[%c0_0, %c0_1, %c0_2] : memref<1x3x256xbf16, #tpu.memory_space<vmem>>, vector<1x3x256xbf16>
    %2 = arith.extf %1 : vector<1x3x256xbf16> to vector<1x3x256xf32>
    %3 = vector.shape_cast %2 : vector<1x3x256xf32> to vector<3x256xf32>
    %c1_i32 = arith.constant 1 : i32
    %4 = tpu.dynamic_rotate %3 by %c1_i32 dim 1 : vector<3x256xf32>, i32 -> vector<3x256xf32>
    %5 = arith.addf %3, %4 : vector<3x256xf32>
    %c255_i32 = arith.constant 255 : i32
    %6 = tpu.dynamic_rotate %3 by %c255_i32 dim 1 : vector<3x256xf32>, i32 -> vector<3x256xf32>
    %7 = arith.addf %5, %6 : vector<3x256xf32>
    %c16_i32 = arith.constant 16 : i32
    %8 = tpu.dynamic_rotate %7 by %c16_i32 dim 1 : vector<3x256xf32>, i32 -> vector<3x256xf32>
    %9 = arith.addf %7, %8 : vector<3x256xf32>
    %c240_i32 = arith.constant 240 : i32
    %10 = tpu.dynamic_rotate %7 by %c240_i32 dim 1 : vector<3x256xf32>, i32 -> vector<3x256xf32>
    %11 = arith.addf %9, %10 : vector<3x256xf32>
    %cst = arith.constant 4.000000e+00 : f32
    %12 = vector.broadcast %cst : f32 to vector<3x256xf32>
    %13 = arith.mulf %12, %3 : vector<3x256xf32>
    %14 = arith.addf %11, %13 : vector<3x256xf32>
    %cst_3 = arith.constant 0.0769230798 : f32
    %15 = vector.broadcast %cst_3 : f32 to vector<3x256xf32>
    %16 = arith.mulf %14, %15 : vector<3x256xf32>
    %17 = math.roundeven %16 : vector<3x256xf32>
    %c0_4 = arith.constant 0 : index
    %c0_5 = arith.constant 0 : index
    %c0_6 = arith.constant 0 : index
    %18 = vector.load %arg3[%c0_4, %c0_5, %c0_6] : memref<1x1x256xf32, #tpu.memory_space<vmem>>, vector<1x1x256xf32>
    %19 = vector.shape_cast %18 : vector<1x1x256xf32> to vector<1x256xf32>
    %20 = vector.broadcast %19 : vector<1x256xf32> to vector<3x256xf32>
    %21 = arith.mulf %20, %17 : vector<3x256xf32>
    %cst_7 = arith.constant 1.000000e+00 : f32
    %22 = vector.broadcast %cst_7 : f32 to vector<1x256xf32>
    %23 = arith.subf %22, %19 : vector<1x256xf32>
    %24 = vector.broadcast %23 : vector<1x256xf32> to vector<3x256xf32>
    %25 = arith.mulf %24, %3 : vector<3x256xf32>
    %26 = arith.addf %21, %25 : vector<3x256xf32>
    %27 = vector.broadcast %0 : f32 to vector<3x256xf32>
    %28 = arith.mulf %27, %3 : vector<3x256xf32>
    %cst_8 = arith.constant 1.000000e+00 : f32
    %29 = arith.subf %cst_8, %0 : f32
    %30 = vector.broadcast %29 : f32 to vector<3x256xf32>
    %31 = arith.mulf %30, %26 : vector<3x256xf32>
    %32 = arith.addf %28, %31 : vector<3x256xf32>
    %cst_9 = arith.constant 0.000000e+00 : f32
    %cst_10 = arith.constant 2.550000e+02 : f32
    %33 = vector.broadcast %cst_9 : f32 to vector<3x256xf32>
    %34 = arith.maximumf %33, %32 : vector<3x256xf32>
    %35 = vector.broadcast %cst_10 : f32 to vector<3x256xf32>
    %36 = arith.minimumf %35, %34 : vector<3x256xf32>
    %37 = math.floor %36 : vector<3x256xf32>
    %38 = vector.shape_cast %37 : vector<3x256xf32> to vector<1x3x256xf32>
    %39 = arith.truncf %38 : vector<1x3x256xf32> to vector<1x3x256xbf16>
    %c0_11 = arith.constant 0 : index
    %c0_12 = arith.constant 0 : index
    %c0_13 = arith.constant 0 : index
    %40 = vector.load %arg4[%c0_11, %c0_12, %c0_13] : memref<1x3x256xbf16, #tpu.memory_space<vmem>>, vector<1x3x256xbf16>
    tpu.vector_store %arg4[%c0_11, %c0_12, %c0_13], %39 {strides = array<i32>} : memref<1x3x256xbf16, #tpu.memory_space<vmem>>, vector<1x3x256xbf16>,
    return
  }
  func.func @transform_0(%arg0: i32) -> i32 {
    %c0_i32 = arith.constant 0 : i32
    %c0_i32_0 = arith.constant 0 : i32
    return %c0_i32 : i32
  }
  func.func @transform_1(%arg0: i32) -> (i32, i32, i32) {
    %c0_i32 = arith.constant 0 : i32
    %c0_i32_0 = arith.constant 0 : i32
    %c0_i32_1 = arith.constant 0 : i32
    return %arg0, %c0_i32, %c0_i32_0 : i32, i32, i32
  }
  func.func @transform_2(%arg0: i32) -> (i32, i32, i32) {
    %c0_i32 = arith.constant 0 : i32
    %c0_i32_0 = arith.constant 0 : i32
    %c0_i32_1 = arith.constant 0 : i32
    %c0_i32_2 = arith.constant 0 : i32
    return %c0_i32, %c0_i32_0, %c0_i32_1 : i32, i32, i32
  }
  func.func @transform_3(%arg0: i32) -> (i32, i32, i32) {
    %c0_i32 = arith.constant 0 : i32
    %c0_i32_0 = arith.constant 0 : i32
    %c0_i32_1 = arith.constant 0 : i32
    return %arg0, %c0_i32, %c0_i32_0 : i32, i32, i32
  }
}

</mosaic_0001>

<llo_original>
// kernel: tpu_custom_call.1
$region0: #{tpu_custom_call.1}
  #allocation0 [shape = 'u32[]', space=smem, size = 0x4, offset = 0x4, fixed_abs, tag = 'smem constant byte address 0x4 - core index']
  #allocation1 [shape = 'u32[144,128]{1,0:T(1,128)}', space=vmem, size = 0x12000, scoped, tag = 'internal scratch']
  #allocation2 [shape = 'f32[1]{0:T(128)S(6)}', space=smem, size = 0x200, scoped, tag = 'scoped memory for tpu_custom_call.1']
  %s0 = inlined_call_operand.<no memory space> [shape: f32[1], index: 0, kind: input, shape index: {}]
  %s1 = inlined_call_operand.vmem [shape: bf16[2,3,256], index: 1, kind: input, shape index: {}]
  %s2 = inlined_call_operand.vmem [shape: f32[1,1,256], index: 2, kind: input, shape index: {}]
  %s3 = inlined_call_operand.vmem [shape: bf16[2,3,256], index: 3, kind: output, shape index: {}]
  %s4 = sld [smem:[#allocation0]]
  $region45: #{tpu_custom_call.1} parent=0
    _
  %s6 = ssub.s32 1, %s4
  %s7 = scalar_select 0, %s6, %s4
  %8 = sst [smem:[#allocation2]] %s0
  loop: start=0, step=1, limit=4
  $region2: #{tpu_custom_call.1} parent=0 // loop_pre_header
    _
  $region3: #{tpu_custom_call.1} parent=0 // loop_header
    %s10 = sphi 0, %s14
    %p11 = scmp.ge.s32.totalorder %s10, 4
    %s18 = sphi 0, %s18
    %s20 = sphi 0, %s18
    %s21 = sphi 0, %s20
    %s35 = sphi 0, %s21
    %s41 = sphi 0, %s43
    %s44 = sphi 0, %s41
    %s45 = sphi 0, %s44
    %s61 = sphi 0, %s45
    %s65 = sphi 0, %s65
    %s67 = sphi 0, %s65
    %s68 = sphi 0, %s67
    %s82 = sphi 0, %s68
    %s88 = sphi 0, %s90
    %s91 = sphi 0, %s88
    %s92 = sphi 0, %s91
    %s108 = sphi 0, %s92
  $region4: #{tpu_custom_call.1} parent=0 // loop_header_branch
    %13 = sbr.rel (%p11) target = $region8
  $region5: #{tpu_custom_call.1} parent=0 // loop_body
    %s15 = ssub.s32 %s10, 1
    %s16 = ssub.s32 %s10, 2
    %s17 = sadd.s32 %s10, 1
    %s19 = sadd.s32 %s18, 1
    %p22 = scmp.eq.s32.totalorder %s10, 1
    %p23 = scmp.ne.s32.totalorder %s18, %s20
    %p24 = scmp.eq.s32.totalorder %s10, 0
    %p25 = por %p23, %p24
    %p26 = scmp.ne.s32.totalorder %s18, %s20
    %p27 = scmp.eq.s32.totalorder %s15, 1
    %p28 = por %p26, %p27
    %p29 = scmp.ne.s32.totalorder %s20, %s21
    %p30 = scmp.eq.s32.totalorder %s15, 0
    %p31 = por %p29, %p30
    %p32 = scmp.ne.s32.totalorder %s20, %s21
    %p33 = scmp.eq.s32.totalorder %s16, 1
    %p34 = por %p32, %p33
    %p36 = scmp.ne.s32.totalorder %s21, %s35
    %p37 = scmp.eq.s32.totalorder %s16, 0
    %p38 = por %p36, %p37
    %s39 = ssub.s32 %s10, %s17
    %p40 = scmp.eq.s32.totalorder %s39, 0
    %s42 = sadd.s32 %s41, 1
    %s43 = scalar_select %p40, %s41, %s42
    %p46 = pneg %p40
    %p47 = scmp.eq.s32.totalorder %s10, 1
    %p48 = por %p46, %p47
    %p49 = scmp.ne.s32.totalorder %s41, %s44
    %p50 = scmp.eq.s32.totalorder %s10, 0
    %p51 = por %p49, %p50
    %p52 = scmp.ne.s32.totalorder %s41, %s44
    %p53 = scmp.eq.s32.totalorder %s15, 1
    %p54 = por %p52, %p53
    %p55 = scmp.ne.s32.totalorder %s44, %s45
    %p56 = scmp.eq.s32.totalorder %s15, 0
    %p57 = por %p55, %p56
    %p58 = scmp.ne.s32.totalorder %s44, %s45
    %p59 = scmp.eq.s32.totalorder %s16, 1
    %p60 = por %p58, %p59
    %p62 = scmp.ne.s32.totalorder %s45, %s61
    %p63 = scmp.eq.s32.totalorder %s16, 0
    %p64 = por %p62, %p63
    %s66 = sadd.s32 %s65, 1
    %p69 = scmp.eq.s32.totalorder %s10, 1
    %p70 = scmp.ne.s32.totalorder %s65, %s67
    %p71 = scmp.eq.s32.totalorder %s10, 0
    %p72 = por %p70, %p71
    %p73 = scmp.ne.s32.totalorder %s65, %s67
    %p74 = scmp.eq.s32.totalorder %s15, 1
    %p75 = por %p73, %p74
    %p76 = scmp.ne.s32.totalorder %s67, %s68
    %p77 = scmp.eq.s32.totalorder %s15, 0
    %p78 = por %p76, %p77
    %p79 = scmp.ne.s32.totalorder %s67, %s68
    %p80 = scmp.eq.s32.totalorder %s16, 1
    %p81 = por %p79, %p80
    %p83 = scmp.ne.s32.totalorder %s68, %s82
    %p84 = scmp.eq.s32.totalorder %s16, 0
    %p85 = por %p83, %p84
    %s86 = ssub.s32 %s10, %s17
    %p87 = scmp.eq.s32.totalorder %s86, 0
    %s89 = sadd.s32 %s88, 1
    %s90 = scalar_select %p87, %s88, %s89
    %p93 = pneg %p87
    %p94 = scmp.eq.s32.totalorder %s10, 1
    %p95 = por %p93, %p94
    %p96 = scmp.ne.s32.totalorder %s88, %s91
    %p97 = scmp.eq.s32.totalorder %s10, 0
    %p98 = por %p96, %p97
    %p99 = scmp.ne.s32.totalorder %s88, %s91
    %p100 = scmp.eq.s32.totalorder %s15, 1
    %p101 = por %p99, %p100
    %p102 = scmp.ne.s32.totalorder %s91, %s92
    %p103 = scmp.eq.s32.totalorder %s15, 0
    %p104 = por %p102, %p103
    %p105 = scmp.ne.s32.totalorder %s91, %s92
    %p106 = scmp.eq.s32.totalorder %s16, 1
    %p107 = por %p105, %p106
    %p109 = scmp.ne.s32.totalorder %s92, %s108
    %p110 = scmp.eq.s32.totalorder %s16, 0
    %p111 = por %p109, %p110
    %p112 = scmp.le.s32.totalorder 1, %s10
    %p113 = scmp.lt.s32.totalorder %s10, 3
    %p114 = pnand %p112, %p113
    %p115 = pneg %p114
    // Predicated region
    $region9: #{tpu_custom_call.1} parent=5 // pred_check
      _
    $region10: #{tpu_custom_call.1} parent=5 // pred_check_branch
      %117 = sbr.rel (%p114) target = $region12
    $region11: #{tpu_custom_call.1} parent=5 // pred_region
      %s118 = ssub.s32 %s10, 1
      // Predicated region
      $region13: #{tpu_custom_call.1} parent=11 // pred_check
        %p119 = pneg %p31
      $region14: #{tpu_custom_call.1} parent=11 // pred_check_branch
        %121 = sbr.rel (%p119) target = $region16
      $region15: #{tpu_custom_call.1} parent=11 // pred_region
        _
      $region16: #{tpu_custom_call.1} parent=11 // pred_fallthru
        _
      // Predicated region
      $region17: #{tpu_custom_call.1} parent=11 // pred_check
        %p122 = pneg %p78
      $region18: #{tpu_custom_call.1} parent=11 // pred_check_branch
        %124 = sbr.rel (%p122) target = $region20
      $region19: #{tpu_custom_call.1} parent=11 // pred_region
        _
      $region20: #{tpu_custom_call.1} parent=11 // pred_fallthru
        _
    $region12: #{tpu_custom_call.1} parent=5 // pred_fallthru
      _
    %p125 = scmp.lt.s32.totalorder %s10, 2
    // Predicated region
    $region21: #{tpu_custom_call.1} parent=5 // pred_check
      %p126 = pneg %p125
    $region22: #{tpu_custom_call.1} parent=5 // pred_check_branch
      %128 = sbr.rel (%p126) target = $region24
    $region23: #{tpu_custom_call.1} parent=5 // pred_region
      // Predicated region
      $region25: #{tpu_custom_call.1} parent=23 // pred_check
        %p129 = pneg %p51
      $region26: #{tpu_custom_call.1} parent=23 // pred_check_branch
        %131 = sbr.rel (%p129) target = $region28
      $region27: #{tpu_custom_call.1} parent=23 // pred_region
        %p132 = scmp.lt.s32.totalorder %s10, 1
        %s133 = scalar_select %p132, %s10, 1
        %s134 = smul.addr %s133, 2
        %s135 = smul.addr %s134, 2
        %s136 = scalar_lea.vmem %s1, %s135
      $region28: #{tpu_custom_call.1} parent=23 // pred_fallthru
        _
    $region24: #{tpu_custom_call.1} parent=5 // pred_fallthru
      _
    %p137 = scmp.le.s32.totalorder 1, %s10
    %p138 = scmp.lt.s32.totalorder %s10, 3
    %p139 = pnand %p137, %p138
    %p140 = pneg %p139
    // Predicated region
    $region29: #{tpu_custom_call.1} parent=5 // pred_check
      _
    $region30: #{tpu_custom_call.1} parent=5 // pred_check_branch
      %142 = sbr.rel (%p139) target = $region32
    $region31: #{tpu_custom_call.1} parent=5 // pred_region
      %s143 = ssub.s32 %s10, 1
      %p144 = pneg %p31
      %p145 = pneg %p28
      %p146 = scmp.lt.s32.totalorder %s15, 1
      %s147 = scalar_select %p146, %s15, 1
      %s148 = smul.addr %s147, 2
      %s149 = smul.addr %s148, 2
      %s150 = scalar_lea.vmem %s1, %s149
      %p151 = pneg %p57
      %p152 = pneg %p54
      %p153 = pneg %p78
      %p154 = pneg %p75
      %p155 = pneg %p104
      %p156 = pneg %p101
      %p157 = scmp.lt.s32.totalorder %s15, 1
      %s158 = scalar_select %p157, %s15, 1
      %s159 = smul.addr %s158, 2
      %s160 = smul.addr %s159, 2
      %s161 = scalar_lea.vmem %s3, %s160
      %p162 = scmp.lt.s32.totalorder %s15, 1
      %s163 = scalar_select %p162, %s15, 1
      %s164 = smul.addr %s163, 2
      %s165 = smul.addr %s164, 2
      %s166 = scalar_lea.vmem %s1, %s165
      %p167 = scmp.lt.s32.totalorder %s15, 1
      %s168 = scalar_select %p167, %s15, 1
      %s169 = smul.addr %s168, 2
      %s170 = smul.addr %s169, 2
      %s171 = scalar_lea.vmem %s3, %s170
      %s172 = sld [smem:[#allocation2]]
      %v173 = vld [vmem:[%s166] sm:$0xf]
      %v174 = vunpack.c.l.bf16 %v173
      %v176 = vcombine.high %v174, %v174
      %178 = vrot.lane.b32.xlu0 %v174, 1
      %v179 = vpop.permute.xlu0 %178
      %180 = vrot.lane.b32.xlu0 %v176, 1
      %v181 = vpop.permute.xlu0 %180
      %v182 = vlaneseq
      %v183 = vand.u32 %v182, 127
      %vm184 = vcmp.lt.s32.totalorder %v183, 1
      %v185 = vsel %vm184, %v179, %v181
      %v186 = vsel %vm184, %v181, %v179
      %v189 = vcombine.low %v186, %v185
      %v191 = vadd.f32 %v174, %v189
      %192 = vrot.lane.b32.xlu0 %v174, 127
      %v193 = vpop.permute.xlu0 %192
      %194 = vrot.lane.b32.xlu0 %v176, 127
      %v195 = vpop.permute.xlu0 %194
      %vm196 = vcmp.lt.s32.totalorder %v183, 127
      %v197 = vsel %vm196, %v193, %v195
      %v198 = vsel %vm196, %v195, %v193
      %v201 = vcombine.low %v197, %v198
      %v203 = vadd.f32 %v191, %v201
      %v205 = vcombine.high %v203, %v203
      %207 = vrot.lane.b32.xlu0 %v203, 16
      %v208 = vpop.permute.xlu0 %207
      %209 = vrot.lane.b32.xlu0 %v205, 16
      %v210 = vpop.permute.xlu0 %209
      %vm211 = vcmp.lt.s32.totalorder %v183, 16
      %v212 = vsel %vm211, %v208, %v210
      %v213 = vsel %vm211, %v210, %v208
      %v216 = vcombine.low %v213, %v212
      %v218 = vadd.f32 %v203, %v216
      %219 = vrot.lane.b32.xlu0 %v203, 112
      %v220 = vpop.permute.xlu0 %219
      %221 = vrot.lane.b32.xlu0 %v205, 112
      %v222 = vpop.permute.xlu0 %221
      %vm223 = vcmp.lt.s32.totalorder %v183, 112
      %v224 = vsel %vm223, %v220, %v222
      %v225 = vsel %vm223, %v222, %v220
      %v228 = vcombine.low %v224, %v225
      %v230 = vadd.f32 %v218, %v228
      %v231 = vmul.f32 %v174, 4.0
      %v232 = vadd.f32 %v230, %v231
      %v233 = vmul.f32 %v232, 0.07692308
      %v234 = vround.ne.pseudo %v233
      %v235 = vld [vmem:[%s2] sm:$0x3]
      %v237 = vlaneseq
      %v238 = vshrl.u32 %v237, 7
      %v239 = vsub.s32 0, %v238
      %v240 = vrot.slane %v235, %v239
      %v241 = vlaneseq
      %v242 = vshrl.u32 %v241, 7
      %v243 = vsub.s32 1, %v242
      %v244 = vrot.slane %v235, %v243
      %v248 = vcombine.high %v234, %v234
      %v250 = vmul.f32 %v240, %v234
      %v251 = vmul.f32 %v244, %v248
      %v252 = vsub.f32 1.0, %v235
      %v254 = vlaneseq
      %v255 = vshrl.u32 %v254, 7
      %v256 = vsub.s32 0, %v255
      %v257 = vrot.slane %v252, %v256
      %v258 = vlaneseq
      %v259 = vshrl.u32 %v258, 7
      %v260 = vsub.s32 1, %v259
      %v261 = vrot.slane %v252, %v260
      %v264 = vmul.f32 %v257, %v174
      %v265 = vmul.f32 %v261, %v176
      %v266 = vadd.f32 %v250, %v264
      %v267 = vadd.f32 %v251, %v265
      %v268 = vstv %s172
      %v269 = vmul.f32 %v268, %v174
      %s270 = ssub.f32 1.0, %s172
      %v271 = vstv %s270
      %v272 = vmul.f32 %v271, %v266
      %v273 = vmul.f32 %v271, %v267
      %v276 = vcombine.low %v272, %v273
      %v278 = vadd.f32 %v269, %v276
      %v279 = vmax.f32 %v278, 0.0
      %v280 = vmin.f32 %v279, 255.0
      %v281 = vfloor.f32 %v280
      %v283 = vcombine.high %v281, %v281
      %v285 = vpack.c.bf16 %v281, %v281
      %v286 = vpack.c.bf16 %v283, %v283
      %v289 = vcombine.low %v285, %v286
      %v291 = vunpack.c.l.s4 1983009808
      %v292 = vunpack.c.0.s8 %v291
      %v293 = vlaneseq
      %v294 = vshrl.u32 %v293, 7
      %v295 = vsub.s32 %v292, %v294
      %v296 = vrot.slane %v289, %v295
      %vm298 = vcmask 1041408
      %vm299 = vsmask.f32 1280
      %vm300 = vmand %vm298, %vm299
      %vm301 = vcmask 1043458
      %vm302 = vsmask.f32 3328
      %vm303 = vmand %vm301, %vm302
      %vm304 = vmor %vm303, %vm300
      %v305 = vld [vmem:[%s171] sm:$0xf]
      %v306 = vsel %vm304, %v296, %v305
      %307 = vst [vmem:[%s171] sm:$0xf] %v306
      %p308 = scmp.lt.s32.totalorder %s15, 1
      %s309 = scalar_select %p308, %s15, 1
      %s310 = smul.addr %s309, 2
      %s311 = smul.addr %s310, 2
      %s312 = scalar_lea.vmem %s3, %s311
      // Predicated region
      $region33: #{tpu_custom_call.1} parent=31 // pred_check
        %p313 = pneg %p101
      $region34: #{tpu_custom_call.1} parent=31 // pred_check_branch
        %315 = sbr.rel (%p313) target = $region36
      $region35: #{tpu_custom_call.1} parent=31 // pred_region
        _
      $region36: #{tpu_custom_call.1} parent=31 // pred_fallthru
        _
    $region32: #{tpu_custom_call.1} parent=5 // pred_fallthru
      _
    %p316 = scmp.le.s32.totalorder 2, %s10
    // Predicated region
    $region37: #{tpu_custom_call.1} parent=5 // pred_check
      %p317 = pneg %p316
    $region38: #{tpu_custom_call.1} parent=5 // pred_check_branch
      %319 = sbr.rel (%p317) target = $region40
    $region39: #{tpu_custom_call.1} parent=5 // pred_region
      %s320 = ssub.s32 %s10, 2
      // Predicated region
      $region41: #{tpu_custom_call.1} parent=39 // pred_check
        %p321 = pneg %p107
      $region42: #{tpu_custom_call.1} parent=39 // pred_check_branch
        %323 = sbr.rel (%p321) target = $region44
      $region43: #{tpu_custom_call.1} parent=39 // pred_region
        %p324 = scmp.lt.s32.totalorder %s16, 1
        %s325 = scalar_select %p324, %s16, 1
        %s326 = smul.addr %s325, 2
        %s327 = smul.addr %s326, 2
        %s328 = scalar_lea.vmem %s3, %s327
      $region44: #{tpu_custom_call.1} parent=39 // pred_fallthru
        _
    $region40: #{tpu_custom_call.1} parent=5 // pred_fallthru
      _
  $region6: #{tpu_custom_call.1} parent=0 // loop_footer
    %s14 = sadd.s32 1, %s10
  $region7: #{tpu_custom_call.1} parent=0 // loop_footer_branch
    %9 = sbr.rel target = $region3
  $region8: #{tpu_custom_call.1} parent=0 // loop_exit
    _

</llo_original>
